<compile_context>
chip_gen: v7x
topology: tpu7x:2x2x1
jax: 0.10.0
libtpu: 0.0.40
codegen_flags: <defaults>
</compile_context>

<pallas_src>
import math

import jax
import jax.numpy as jnp
from jax.experimental import pallas as pl
from jax.experimental.pallas import tpu as pltpu


def _h_sigmoid_kernel(x_ref, o_ref):
    x = x_ref[...]
    # h_sigmoid(x) = ReLU6(x + 3) / 6 == clamp(x + 3, 0, 6) / 6
    o_ref[...] = (jnp.minimum(jnp.maximum(x + 3.0, 0.0), 6.0) / 6.0).astype(o_ref.dtype)


def _h_sigmoid_jax(x: jax.Array) -> jax.Array:
    """Pure-JAX path (also the correctness reference)."""
    return jnp.minimum(jnp.maximum(x + 3.0, 0.0), 6.0) / 6.0


# Below this many bytes, kernel launch + pipeline setup dwarfs the work; let
# XLA fuse the clamp instead.
_MIN_PALLAS_BYTES = 256 * 1024


def _target_tile_bytes() -> int:
    """~4 MiB tiles on v6e/v7x (32 MiB scoped-VMEM default), ~2 MiB otherwise."""
    try:
        kind = jax.devices()[0].device_kind.lower()
    except Exception:  # pragma: no cover - no device query available
        return 2 << 20
    if "v6" in kind or "v7" in kind or "7x" in kind:
        return 4 << 20
    # v5e (16 MiB scoped-VMEM default) or unknown chip: stay at 2 MiB, which is
    # already on the >=85% HBM-roofline plateau.
    return 2 << 20


def _round_up(n: int, m: int) -> int:
    return -(-n // m) * m


def _choose_layout(total: int, itemsize: int, tile_bytes: int):
    """Pick (lanes, rows, bulk, tm) for a lane-dense 2D slab over the bulk."""
    # Sublane alignment: 8 rows for f32, 16 rows for bf16/f16.
    row_align = max(8, 32 // itemsize)

    # Widest lane count (multiple of 128) that still leaves >= row_align rows.
    lanes = 128
    for cand in (2048, 1024, 512, 256, 128):
        if total // cand >= row_align:
            lanes = cand
            break

    bulk = (total // lanes) * lanes  # lane-dense bulk; tail (< lanes) done in JAX
    rows = bulk // lanes
    if rows == 0:
        return lanes, 0, 0, row_align

    # Rows per tile: ~tile_bytes per block, multiple of row_align, but capped at
    # ~ceil(rows/2) so the "parallel" grid has >= 2 steps (v7x megacore sharding).
    budget_rows = max(
        row_align, (tile_bytes // (lanes * itemsize)) // row_align * row_align
    )
    half_rows = _round_up(-(-rows // 2), row_align)
    tm = max(row_align, min(budget_rows, half_rows))
    return lanes, rows, bulk, tm


def h_sigmoid(x: jax.Array, *, min_pallas_bytes: int = _MIN_PALLAS_BYTES) -> jax.Array:
    """Elementwise hard-sigmoid, semantics identical to the PyTorch module."""
    dtype = x.dtype
    if not jnp.issubdtype(dtype, jnp.floating):
        raise TypeError(f"h_sigmoid expects a floating-point input, got {dtype}")

    total = math.prod(x.shape)
    itemsize = jnp.dtype(dtype).itemsize

    if total == 0 or total * itemsize < min_pallas_bytes:
        return _h_sigmoid_jax(x)

    tile_bytes = _target_tile_bytes()
    lanes, rows, bulk, tm = _choose_layout(total, itemsize, tile_bytes)
    if rows == 0:  # too small to form even one (row_align, 128) slab
        return _h_sigmoid_jax(x)

    flat = x.reshape(total)
    bulk2d = (flat if bulk == total else flat[:bulk]).reshape(rows, lanes)

    grid = pl.cdiv(rows, tm)
    tile_actual = tm * lanes * itemsize
    # in + out, double-buffered, plus headroom for internal scratch.
    vmem_limit = min(48 << 20, max(16 << 20, 4 * tile_actual + (4 << 20)))

    out2d = pl.pallas_call(
        _h_sigmoid_kernel,
        out_shape=jax.ShapeDtypeStruct((rows, lanes), dtype),
        grid=(grid,),
        in_specs=[pl.BlockSpec((tm, lanes), lambda i: (i, 0))],
        out_specs=pl.BlockSpec((tm, lanes), lambda i: (i, 0)),
        compiler_params=pltpu.CompilerParams(
            dimension_semantics=("parallel",),
            vmem_limit_bytes=vmem_limit,
        ),
    )(bulk2d)

    out_flat = out2d.reshape(bulk)
    if bulk != total:
        # Lane-ragged tail (< lanes elements, rare): cheaper to do in plain JAX
        # than to pad the whole array through an extra HBM pass.
        out_flat = jnp.concatenate([out_flat, _h_sigmoid_jax(flat[bulk:])])
    return out_flat.reshape(x.shape)


if __name__ == "__main__":
    key = jax.random.PRNGKey(0)

    # Small NCHW input consistent with the PyTorch module usage.
    # min_pallas_bytes=0 forces the Pallas path so the kernel is exercised.
    x = jax.random.normal(key, (2, 4, 16, 16), dtype=jnp.float32) * 4.0
    out = jax.block_until_ready(h_sigmoid(x, min_pallas_bytes=0))
    ref = _h_sigmoid_jax(x)
    assert out.shape == x.shape
    assert out.dtype == x.dtype
    assert jnp.allclose(out, ref, atol=1e-6, rtol=1e-6)

    # H*W*C*B not a multiple of tile rows -> exercises the cdiv grid with a
    # ragged (masked) last block, with NO host-side padding or slicing.
    x2 = jax.random.normal(jax.random.PRNGKey(0), (2, 8, 56, 56),
                           dtype=jnp.float32) * 4.0
    out2 = jax.block_until_ready(h_sigmoid(x2, min_pallas_bytes=0))
    assert out2.shape == x2.shape
    assert jnp.allclose(out2, _h_sigmoid_jax(x2), atol=1e-6, rtol=1e-6)

    # bf16 path through the default (non-forced) Pallas dispatch threshold.
    x3 = jax.random.normal(jax.random.PRNGKey(0), (2, 64, 32, 32),
                           dtype=jnp.bfloat16) * 4.0
    out3 = jax.block_until_ready(h_sigmoid(x3))
    assert out3.dtype == jnp.bfloat16
    assert jnp.allclose(out3.astype(jnp.float32),
                        _h_sigmoid_jax(x3).astype(jnp.float32),
                        atol=1e-2, rtol=1e-2)

    # Lane-ragged total (not a multiple of 128): bulk via Pallas, tail via JAX.
    x4 = jax.random.normal(jax.random.PRNGKey(0), (3, 5, 7, 11),
                           dtype=jnp.float32) * 4.0
    out4 = jax.block_until_ready(h_sigmoid(x4, min_pallas_bytes=0))
    assert out4.shape == x4.shape
    assert jnp.allclose(out4, _h_sigmoid_jax(x4), atol=1e-6, rtol=1e-6)

    print("KERNEL_OK")
</pallas_src>

<mosaic_0001>
module attributes {stable_mosaic.version = 11 : i64} {
  func.func @_h_sigmoid_kernel(%arg0: i32, %arg1: memref<8x256xf32, #tpu.memory_space<vmem>>, %arg2: memref<8x256xf32, #tpu.memory_space<vmem>>) attributes {dimension_semantics = [#tpu.dimension_semantics<parallel>], iteration_bounds = array<i64: 1>, scalar_prefetch = 0 : i64, scratch_operands = 0 : i64, tpu.core_type = #tpu.core_type<tc>, window_params = [{transform_indices = @transform_0, window_bounds = array<i64: 8, 256>}, {transform_indices = @transform_1, window_bounds = array<i64: 8, 256>}]} {
    %c0 = arith.constant 0 : index
    %c0_0 = arith.constant 0 : index
    %0 = vector.load %arg1[%c0, %c0_0] : memref<8x256xf32, #tpu.memory_space<vmem>>, vector<8x256xf32>
    %cst = arith.constant 3.000000e+00 : f32
    %1 = vector.broadcast %cst : f32 to vector<8x256xf32>
    %2 = arith.addf %0, %1 : vector<8x256xf32>
    %cst_1 = arith.constant 0.000000e+00 : f32
    %3 = vector.broadcast %cst_1 : f32 to vector<8x256xf32>
    %4 = arith.maximumf %2, %3 : vector<8x256xf32>
    %cst_2 = arith.constant 6.000000e+00 : f32
    %5 = vector.broadcast %cst_2 : f32 to vector<8x256xf32>
    %6 = arith.minimumf %4, %5 : vector<8x256xf32>
    %cst_3 = arith.constant 6.000000e+00 : f32
    %7 = vector.broadcast %cst_3 : f32 to vector<8x256xf32>
    %8 = arith.divf %6, %7 : vector<8x256xf32>
    %c0_4 = arith.constant 0 : index
    %c0_5 = arith.constant 0 : index
    %9 = vector.load %arg2[%c0_4, %c0_5] : memref<8x256xf32, #tpu.memory_space<vmem>>, vector<8x256xf32>
    tpu.vector_store %arg2[%c0_4, %c0_5], %8 {strides = array<i32>} : memref<8x256xf32, #tpu.memory_space<vmem>>, vector<8x256xf32>,
    return
  }
  func.func @transform_0(%arg0: i32) -> (i32, i32) {
    %c0_i32 = arith.constant 0 : i32
    %c0_i32_0 = arith.constant 0 : i32
    return %arg0, %c0_i32 : i32, i32
  }
  func.func @transform_1(%arg0: i32) -> (i32, i32) {
    %c0_i32 = arith.constant 0 : i32
    %c0_i32_0 = arith.constant 0 : i32
    return %arg0, %c0_i32 : i32, i32
  }
}

</mosaic_0001>

<llo_original>
// kernel: tpu_custom_call.1
$region0: #{tpu_custom_call.1}
  #allocation0 [shape = 'u32[]', space=smem, size = 0x4, offset = 0x4, fixed_abs, tag = 'smem constant byte address 0x4 - core index']
  #allocation1 [shape = 'u32[144,128]{1,0:T(1,128)}', space=vmem, size = 0x12000, scoped, tag = 'internal scratch']
  %s0 = inlined_call_operand.hbm [shape: f32[8,256], index: 0, kind: input, shape index: {}]
  %s1 = inlined_call_operand.hbm [shape: f32[8,256], index: 1, kind: output, shape index: {}]
  %s2 = sld [smem:[#allocation0]]
  $region18: #{tpu_custom_call.1} parent=0
    _
  %s4 = ssub.s32 1, %s2
  %s5 = scalar_select 0, %s4, %s2
  $region1: #{tpu_custom_call.1} parent=0
    #allocation2 [shape = 'u8[8192]{0}', space=vmem, size = 0x2000, scoped, tag = 'input window, operand 0, single buffered']
    #allocation3 [shape = 's32[1]{0}', space=sflag, size = 0x4, scoped, tag = 'scoped memory for tpu_custom_call.1']
    #allocation4 [shape = 's32[1]{0}', space=sflag, size = 0x4, scoped, tag = 'scoped memory for tpu_custom_call.1']
    #allocation5 [shape = 'u8[8192]{0}', space=vmem, size = 0x2000, scoped, tag = 'output window, operand 0, single buffered']
    %6 = vsyncpa [#allocation3], 0
    %7 = vsyncpa [#allocation4], 0
    // Predicated region
    $region2: #{tpu_custom_call.1} parent=1 // pred_check
      _
    $region3: #{tpu_custom_call.1} parent=1 // pred_check_branch
      %9 = sbr.rel (0) target = $region5
    $region4: #{tpu_custom_call.1} parent=1 // pred_region
      %s11 = ssub.s32 256, 256
      %12 = vsyncadd [#allocation3], %s11
      %s14 = sshll.u32 [#allocation2], 4
      %s15 = int_to_ptr.vmem [resolvable:$true] %s14
      %17 = dma.hbm_to_vmem [thread:$0]  %s0, 256, %s15, [#allocation3]
    $region5: #{tpu_custom_call.1} parent=1 // pred_fallthru
      _
    // Predicated region
    $region6: #{tpu_custom_call.1} parent=1 // pred_check
      _
    $region7: #{tpu_custom_call.1} parent=1 // pred_check_branch
      %19 = sbr.rel (0) target = $region9
    $region8: #{tpu_custom_call.1} parent=1 // pred_region
      %20 = dma.done [#allocation3], 256
    $region9: #{tpu_custom_call.1} parent=1 // pred_fallthru
      _
    %v21 = vld [vmem:[#allocation2] sm:$0xff]
    %v22 = vld [vmem:[#allocation2 + $0x8] sm:$0xff]
    %v23 = vadd.f32 %v21, 3.0
    %v24 = vadd.f32 %v22, 3.0
    %v25 = vmax.f32 %v23, 0.0
    %v26 = vmax.f32 %v24, 0.0
    %v27 = vmin.f32 %v25, 6.0
    %v28 = vmin.f32 %v26, 6.0
    %v29 = vrcp.pop 6.0
    %v30 = vmul.f32 %v27, %v29
    %v31 = vmul.f32 %v28, %v29
    %32 = vst [vmem:[#allocation5] sm:$0xff] %v30
    %33 = vst [vmem:[#allocation5 + $0x8] sm:$0xff] %v31
    // Predicated region
    $region10: #{tpu_custom_call.1} parent=1 // pred_check
      _
    $region11: #{tpu_custom_call.1} parent=1 // pred_check_branch
      %35 = sbr.rel (0) target = $region13
    $region12: #{tpu_custom_call.1} parent=1 // pred_region
      %s37 = ssub.s32 256, 256
      %38 = vsyncadd [#allocation4], %s37
      %s40 = sshll.u32 [#allocation5], 4
      %s41 = int_to_ptr.vmem [resolvable:$true] %s40
      %43 = dma.vmem_to_hbm [thread:$0]  %s41, 256, %s1, [#allocation4]
    $region13: #{tpu_custom_call.1} parent=1 // pred_fallthru
      _
    // Predicated region
    $region14: #{tpu_custom_call.1} parent=1 // pred_check
      _
    $region15: #{tpu_custom_call.1} parent=1 // pred_check_branch
      %45 = sbr.rel (0) target = $region17
    $region16: #{tpu_custom_call.1} parent=1 // pred_region
      %46 = dma.done [#allocation4], 256
    $region17: #{tpu_custom_call.1} parent=1 // pred_fallthru
      _
    %47 = vsyncpa [#allocation3], 1
    %48 = vsyncpa [#allocation4], 1

</llo_original>
